<compile_context>
chip_gen: v6e
topology: v6e:2x2x1
jax: 0.10.0
libtpu: 0.0.40
codegen_flags: <defaults>
</compile_context>

<pallas_src>
import jax
import jax.numpy as jnp
import numpy as np
from jax.experimental import pallas as pl
from jax.experimental.pallas import tpu as pltpu


def _round_up(x, m):
    return ((x + m - 1) // m) * m


def _pick_tile(n, cands=(512, 256, 128)):
    for c in cands:
        if n % c == 0:
            return c
    return n


# --------------------------------------------------------------------------- #
# Kernel 1: time-blocked tanh recurrence.
#   grid = (num_batch_blocks, num_time_blocks)  ["parallel", "arbitrary"]
#   refs: emb (T_BLK, BB, Hp), h0 (1, BB, Hp), Whh^T (Hp, Hp)
#   outs: Y   (T_BLK, BB, Hp), h_T (1, BB, Hp)
# --------------------------------------------------------------------------- #
def _rnn_recurrence_kernel(emb_ref, h0_ref, whh_t_ref, y_ref, hT_ref, h_scr):
    t_blk = pl.program_id(1)

    @pl.when(t_blk == 0)
    def _():
        h_scr[...] = h0_ref[0]            # (BB, Hp) initial hidden state

    whh_t = whh_t_ref[...]                # resident (constant index map)
    n_steps = emb_ref.shape[0]            # static T_BLK

    def step(i, h):
        # emb already contains x_t @ Wih^T + b_ih + b_hh (bias folded).
        h = jnp.tanh(emb_ref[i]
                     + jnp.dot(h, whh_t, preferred_element_type=jnp.float32))
        y_ref[i] = h
        return h

    h = jax.lax.fori_loop(0, n_steps, step, h_scr[...], unroll=True)
    h_scr[...] = h
    # Write the running hidden state every grid step (block is VMEM-resident,
    # store is ~free); final writeback carries the last timestep's state.
    hT_ref[0] = h


# --------------------------------------------------------------------------- #
# Kernel 2: lane-dense dense projection  logits = Y2 @ Wd^T + bd
#   grid = (M // tm, Vp // tn)  ["parallel", "parallel"]
# --------------------------------------------------------------------------- #
def _dense_kernel(y_ref, wdt_ref, bd_ref, o_ref):
    o_ref[...] = (jnp.dot(y_ref[...], wdt_ref[...],
                          preferred_element_type=jnp.float32)
                  + bd_ref[...])


def rnn_model_forward(inputs, state, params, vocab_size):
    """inputs: (B, S) int token ids; state: (1, B, H) float32.

    Returns (logits (S*B, vocab), new_state (1, B, H)) -- matching
    RNNModel.forward for nn.RNN(tanh, 1 layer, unidirectional).
    """
    Wih, Whh, bih, bhh, Wd, bd = (params[k] for k in
                                  ("Wih", "Whh", "bih", "bhh", "Wd", "bd"))
    B, S = inputs.shape
    H = Whh.shape[0]
    V = vocab_size

    # Hardware-aligned padded sizes: sublane multiple of 8, lane multiple of 128.
    Bp = _round_up(B, 8)
    Hp = _round_up(H, 128)
    Vp = _round_up(V, 128)

    # ---- glue (plain JAX): embedding gather replaces the one-hot matmul ----
    # one_hot(x) @ Wih^T == Wih^T[x]; fold both RNN biases into the rows.
    emb_table = Wih.T + (bih + bhh)[None, :]                 # (V, H)
    emb = emb_table[inputs.T]                                # (S, B, H) time-major
    emb = jnp.pad(emb, ((0, 0), (0, Bp - B), (0, Hp - H)))   # (S, Bp, Hp)
    h0 = jnp.pad(state, ((0, 0), (0, Bp - B), (0, Hp - H)))  # (1, Bp, Hp)
    whh_t = jnp.pad(Whh.T, ((0, Hp - H), (0, Hp - H)))       # (Hp, Hp)
    wd_t = jnp.pad(Wd.T, ((0, Hp - H), (0, Vp - V)))         # (Hp, Vp)
    bd2 = jnp.pad(bd.reshape(1, V), ((0, 0), (0, Vp - V)))   # (1, Vp)

    # Time blocking: largest divisor of S that is <= 32.
    T_BLK = 1
    for cand in range(min(S, 32), 0, -1):
        if S % cand == 0:
            T_BLK = cand
            break
    NT = S // T_BLK

    # Batch blocking: at most 2 blocks (one per v7x TensorCore), each >= 8 rows.
    NB = 2 if Bp % 16 == 0 else 1
    BB = Bp // NB

    # ---- recurrence kernel ----
    y, hT = pl.pallas_call(
        _rnn_recurrence_kernel,
        out_shape=(jax.ShapeDtypeStruct((S, Bp, Hp), jnp.float32),
                   jax.ShapeDtypeStruct((1, Bp, Hp), jnp.float32)),
        grid=(NB, NT),
        in_specs=[
            pl.BlockSpec((T_BLK, BB, Hp), lambda b, t: (t, b, 0)),  # emb
            pl.BlockSpec((1, BB, Hp), lambda b, t: (0, b, 0)),      # h0
            pl.BlockSpec((Hp, Hp), lambda b, t: (0, 0)),            # Whh^T
        ],
        out_specs=[
            pl.BlockSpec((T_BLK, BB, Hp), lambda b, t: (t, b, 0)),  # Y
            pl.BlockSpec((1, BB, Hp), lambda b, t: (0, b, 0)),      # h_T
        ],
        scratch_shapes=[pltpu.VMEM((BB, Hp), jnp.float32)],
        compiler_params=pltpu.CompilerParams(
            dimension_semantics=("parallel", "arbitrary")),
    )(emb, h0, whh_t)

    # ---- dense projection kernel (single big, lane-dense matmul) ----
    M = S * Bp
    tm = _pick_tile(M)
    tn = _pick_tile(Vp)

    logits_pad = pl.pallas_call(
        _dense_kernel,
        out_shape=jax.ShapeDtypeStruct((M, Vp), jnp.float32),
        grid=(M // tm, Vp // tn),
        in_specs=[
            pl.BlockSpec((tm, Hp), lambda i, j: (i, 0)),   # Y rows
            pl.BlockSpec((Hp, tn), lambda i, j: (0, j)),   # Wd^T cols
            pl.BlockSpec((1, tn), lambda i, j: (0, j)),    # bias cols
        ],
        out_specs=pl.BlockSpec((tm, tn), lambda i, j: (i, j)),
        compiler_params=pltpu.CompilerParams(
            dimension_semantics=("parallel", "parallel")),
    )(y.reshape(M, Hp), wd_t, bd2)

    # Strip padding and restore PyTorch layout/ordering.
    logits = logits_pad.reshape(S, Bp, Vp)[:, :B, :V].reshape(S * B, V)
    new_state = hT[:, :B, :H]
    return logits, new_state


def _reference(inputs, state, params, vocab_size):
    """Pure-JAX reference mirroring PyTorch RNNModel.forward."""
    Wih, Whh, bih, bhh, Wd, bd = (params[k] for k in
                                  ("Wih", "Whh", "bih", "bhh", "Wd", "bd"))
    x = jax.nn.one_hot(inputs.T, vocab_size, dtype=jnp.float32)  # (S, B, V)
    h0 = state[0]

    def step(h, xt):
        h_new = jnp.tanh(xt @ Wih.T + bih + h @ Whh.T + bhh)
        return h_new, h_new

    hT, Y = jax.lax.scan(step, h0, x)
    logits = Y.reshape(-1, Y.shape[-1]) @ Wd.T + bd
    return logits, hT[None]


if __name__ == "__main__":
    B, S, V, H = 2, 8, 16, 32

    key = jax.random.PRNGKey(0)
    ks = jax.random.split(key, 8)
    bound = 1.0 / np.sqrt(H)   # PyTorch nn.RNN / nn.Linear default init bound
    params = {
        "Wih": jax.random.uniform(ks[0], (H, V), jnp.float32, -bound, bound),
        "Whh": jax.random.uniform(ks[1], (H, H), jnp.float32, -bound, bound),
        "bih": jax.random.uniform(ks[2], (H,), jnp.float32, -bound, bound),
        "bhh": jax.random.uniform(ks[3], (H,), jnp.float32, -bound, bound),
        "Wd": jax.random.uniform(ks[4], (V, H), jnp.float32, -bound, bound),
        "bd": jax.random.uniform(ks[5], (V,), jnp.float32, -bound, bound),
    }
    inputs = jax.random.randint(ks[6], (B, S), 0, V, dtype=jnp.int32)
    state = jax.random.normal(ks[7], (1, B, H), jnp.float32)

    logits, new_state = rnn_model_forward(inputs, state, params, V)
    jax.block_until_ready((logits, new_state))

    ref_logits, ref_state = _reference(inputs, state, params, V)
    np.testing.assert_allclose(np.asarray(logits), np.asarray(ref_logits),
                               rtol=1e-5, atol=1e-5)
    np.testing.assert_allclose(np.asarray(new_state), np.asarray(ref_state),
                               rtol=1e-5, atol=1e-5)

    assert logits.shape == (S * B, V)
    assert new_state.shape == (1, B, H)
    print("KERNEL_OK")
</pallas_src>

<mosaic_0001>
module attributes {stable_mosaic.version = 11 : i64} {
  func.func @_rnn_recurrence_kernel(%arg0: i32, %arg1: i32, %arg2: memref<8x8x128xf32, #tpu.memory_space<vmem>>, %arg3: memref<1x8x128xf32, #tpu.memory_space<vmem>>, %arg4: memref<128x128xf32, #tpu.memory_space<vmem>>, %arg5: memref<8x8x128xf32, #tpu.memory_space<vmem>>, %arg6: memref<1x8x128xf32, #tpu.memory_space<vmem>>, %arg7: memref<8x128xf32, #tpu.memory_space<vmem>>) attributes {dimension_semantics = [#tpu.dimension_semantics<parallel>, #tpu.dimension_semantics<arbitrary>], iteration_bounds = array<i64: 1, 1>, scalar_prefetch = 0 : i64, scratch_operands = 1 : i64, tpu.core_type = #tpu.core_type<tc>, window_params = [{transform_indices = @transform_0, window_bounds = array<i64: 8, 8, 128>}, {transform_indices = @transform_1, window_bounds = array<i64: 1, 8, 128>}, {pipeline_mode = #tpu.pipeline_mode<synchronous>, transform_indices = @transform_2, window_bounds = array<i64: 128, 128>}, {transform_indices = @transform_3, window_bounds = array<i64: 8, 8, 128>}, {transform_indices = @transform_4, window_bounds = array<i64: 1, 8, 128>}]} {
    %c0_i32 = arith.constant 0 : i32
    %0 = arith.cmpi eq, %arg1, %c0_i32 : i32
    %1 = arith.extui %0 : i1 to i32
    %c0_i32_0 = arith.constant 0 : i32
    %2 = arith.cmpi ne, %1, %c0_i32_0 : i32
    scf.if %2 {
      %c0_49 = arith.constant 0 : index
      %c0_50 = arith.constant 0 : index
      %c0_51 = arith.constant 0 : index
      %89 = vector.load %arg3[%c0_49, %c0_50, %c0_51] : memref<1x8x128xf32, #tpu.memory_space<vmem>>, vector<1x8x128xf32>
      %90 = vector.shape_cast %89 : vector<1x8x128xf32> to vector<8x128xf32>
      %c0_52 = arith.constant 0 : index
      %c0_53 = arith.constant 0 : index
      %91 = vector.load %arg7[%c0_52, %c0_53] : memref<8x128xf32, #tpu.memory_space<vmem>>, vector<8x128xf32>
      tpu.vector_store %arg7[%c0_52, %c0_53], %90 {strides = array<i32>} : memref<8x128xf32, #tpu.memory_space<vmem>>, vector<8x128xf32>,
    } else {
    }
    %c0 = arith.constant 0 : index
    %c0_1 = arith.constant 0 : index
    %3 = vector.load %arg4[%c0, %c0_1] : memref<128x128xf32, #tpu.memory_space<vmem>>, vector<128x128xf32>
    %c0_2 = arith.constant 0 : index
    %c0_3 = arith.constant 0 : index
    %4 = vector.load %arg7[%c0_2, %c0_3] : memref<8x128xf32, #tpu.memory_space<vmem>>, vector<8x128xf32>
    %c0_i32_4 = arith.constant 0 : i32
    %5 = arith.index_cast %c0_i32_4 : i32 to index
    %c0_5 = arith.constant 0 : index
    %c0_6 = arith.constant 0 : index
    %6 = vector.load %arg2[%5, %c0_5, %c0_6] : memref<8x8x128xf32, #tpu.memory_space<vmem>>, vector<1x8x128xf32>
    %7 = vector.shape_cast %6 : vector<1x8x128xf32> to vector<8x128xf32>
    %cst = arith.constant dense<0.000000e+00> : vector<8x128xf32>
    %8 = tpu.matmul %4, %3, %cst {dimension_numbers = #tpu.dot_dimension_numbers<[1], [0], [0], [1], [0, 0, 1, 1], [], []>} : vector<8x128xf32>, vector<128x128xf32>, vector<8x128xf32> -> vector<8x128xf32>
    %9 = arith.addf %7, %8 : vector<8x128xf32>
    %10 = math.tanh %9 : vector<8x128xf32>
    %11 = arith.index_cast %c0_i32_4 : i32 to index
    %c0_7 = arith.constant 0 : index
    %c0_8 = arith.constant 0 : index
    %12 = vector.load %arg5[%11, %c0_7, %c0_8] : memref<8x8x128xf32, #tpu.memory_space<vmem>>, vector<1x8x128xf32>
    %13 = vector.shape_cast %12 : vector<1x8x128xf32> to vector<8x128xf32>
    %14 = vector.shape_cast %10 : vector<8x128xf32> to vector<1x8x128xf32>
    tpu.vector_store %arg5[%11, %c0_7, %c0_8], %14 {strides = array<i32>} : memref<8x8x128xf32, #tpu.memory_space<vmem>>, vector<1x8x128xf32>,
    %c1_i32 = arith.constant 1 : i32
    %15 = arith.index_cast %c1_i32 : i32 to index
    %c0_9 = arith.constant 0 : index
    %c0_10 = arith.constant 0 : index
    %16 = vector.load %arg2[%15, %c0_9, %c0_10] : memref<8x8x128xf32, #tpu.memory_space<vmem>>, vector<1x8x128xf32>
    %17 = vector.shape_cast %16 : vector<1x8x128xf32> to vector<8x128xf32>
    %cst_11 = arith.constant dense<0.000000e+00> : vector<8x128xf32>
    %18 = tpu.matmul %10, %3, %cst_11 {dimension_numbers = #tpu.dot_dimension_numbers<[1], [0], [0], [1], [0, 0, 1, 1], [], []>} : vector<8x128xf32>, vector<128x128xf32>, vector<8x128xf32> -> vector<8x128xf32>
    %19 = arith.addf %17, %18 : vector<8x128xf32>
    %20 = math.tanh %19 : vector<8x128xf32>
    %21 = arith.index_cast %c1_i32 : i32 to index
    %c0_12 = arith.constant 0 : index
    %c0_13 = arith.constant 0 : index
    %22 = vector.load %arg5[%21, %c0_12, %c0_13] : memref<8x8x128xf32, #tpu.memory_space<vmem>>, vector<1x8x128xf32>
    %23 = vector.shape_cast %22 : vector<1x8x128xf32> to vector<8x128xf32>
    %24 = vector.shape_cast %20 : vector<8x128xf32> to vector<1x8x128xf32>
    tpu.vector_store %arg5[%21, %c0_12, %c0_13], %24 {strides = array<i32>} : memref<8x8x128xf32, #tpu.memory_space<vmem>>, vector<1x8x128xf32>,
    %c2_i32 = arith.constant 2 : i32
    %25 = arith.index_cast %c2_i32 : i32 to index
    %c0_14 = arith.constant 0 : index
    %c0_15 = arith.constant 0 : index
    %26 = vector.load %arg2[%25, %c0_14, %c0_15] : memref<8x8x128xf32, #tpu.memory_space<vmem>>, vector<1x8x128xf32>
    %27 = vector.shape_cast %26 : vector<1x8x128xf32> to vector<8x128xf32>
    %cst_16 = arith.constant dense<0.000000e+00> : vector<8x128xf32>
    %28 = tpu.matmul %20, %3, %cst_16 {dimension_numbers = #tpu.dot_dimension_numbers<[1], [0], [0], [1], [0, 0, 1, 1], [], []>} : vector<8x128xf32>, vector<128x128xf32>, vector<8x128xf32> -> vector<8x128xf32>
    %29 = arith.addf %27, %28 : vector<8x128xf32>
    %30 = math.tanh %29 : vector<8x128xf32>
    %31 = arith.index_cast %c2_i32 : i32 to index
    %c0_17 = arith.constant 0 : index
    %c0_18 = arith.constant 0 : index
    %32 = vector.load %arg5[%31, %c0_17, %c0_18] : memref<8x8x128xf32, #tpu.memory_space<vmem>>, vector<1x8x128xf32>
    %33 = vector.shape_cast %32 : vector<1x8x128xf32> to vector<8x128xf32>
    %34 = vector.shape_cast %30 : vector<8x128xf32> to vector<1x8x128xf32>
    tpu.vector_store %arg5[%31, %c0_17, %c0_18], %34 {strides = array<i32>} : memref<8x8x128xf32, #tpu.memory_space<vmem>>, vector<1x8x128xf32>,
    %c3_i32 = arith.constant 3 : i32
    %35 = arith.index_cast %c3_i32 : i32 to index
    %c0_19 = arith.constant 0 : index
    %c0_20 = arith.constant 0 : index
    %36 = vector.load %arg2[%35, %c0_19, %c0_20] : memref<8x8x128xf32, #tpu.memory_space<vmem>>, vector<1x8x128xf32>
    %37 = vector.shape_cast %36 : vector<1x8x128xf32> to vector<8x128xf32>
    %cst_21 = arith.constant dense<0.000000e+00> : vector<8x128xf32>
    %38 = tpu.matmul %30, %3, %cst_21 {dimension_numbers = #tpu.dot_dimension_numbers<[1], [0], [0], [1], [0, 0, 1, 1], [], []>} : vector<8x128xf32>, vector<128x128xf32>, vector<8x128xf32> -> vector<8x128xf32>
    %39 = arith.addf %37, %38 : vector<8x128xf32>
    %40 = math.tanh %39 : vector<8x128xf32>
    %41 = arith.index_cast %c3_i32 : i32 to index
    %c0_22 = arith.constant 0 : index
    %c0_23 = arith.constant 0 : index
    %42 = vector.load %arg5[%41, %c0_22, %c0_23] : memref<8x8x128xf32, #tpu.memory_space<vmem>>, vector<1x8x128xf32>
    %43 = vector.shape_cast %42 : vector<1x8x128xf32> to vector<8x128xf32>
    %44 = vector.shape_cast %40 : vector<8x128xf32> to vector<1x8x128xf32>
    tpu.vector_store %arg5[%41, %c0_22, %c0_23], %44 {strides = array<i32>} : memref<8x8x128xf32, #tpu.memory_space<vmem>>, vector<1x8x128xf32>,
    %c4_i32 = arith.constant 4 : i32
    %45 = arith.index_cast %c4_i32 : i32 to index
    %c0_24 = arith.constant 0 : index
    %c0_25 = arith.constant 0 : index
    %46 = vector.load %arg2[%45, %c0_24, %c0_25] : memref<8x8x128xf32, #tpu.memory_space<vmem>>, vector<1x8x128xf32>
    %47 = vector.shape_cast %46 : vector<1x8x128xf32> to vector<8x128xf32>
    %cst_26 = arith.constant dense<0.000000e+00> : vector<8x128xf32>
    %48 = tpu.matmul %40, %3, %cst_26 {dimension_numbers = #tpu.dot_dimension_numbers<[1], [0], [0], [1], [0, 0, 1, 1], [], []>} : vector<8x128xf32>, vector<128x128xf32>, vector<8x128xf32> -> vector<8x128xf32>
    %49 = arith.addf %47, %48 : vector<8x128xf32>
    %50 = math.tanh %49 : vector<8x128xf32>
    %51 = arith.index_cast %c4_i32 : i32 to index
    %c0_27 = arith.constant 0 : index
    %c0_28 = arith.constant 0 : index
    %52 = vector.load %arg5[%51, %c0_27, %c0_28] : memref<8x8x128xf32, #tpu.memory_space<vmem>>, vector<1x8x128xf32>
    %53 = vector.shape_cast %52 : vector<1x8x128xf32> to vector<8x128xf32>
    %54 = vector.shape_cast %50 : vector<8x128xf32> to vector<1x8x128xf32>
    tpu.vector_store %arg5[%51, %c0_27, %c0_28], %54 {strides = array<i32>} : memref<8x8x128xf32, #tpu.memory_space<vmem>>, vector<1x8x128xf32>,
    %c5_i32 = arith.constant 5 : i32
    %55 = arith.index_cast %c5_i32 : i32 to index
    %c0_29 = arith.constant 0 : index
    %c0_30 = arith.constant 0 : index
    %56 = vector.load %arg2[%55, %c0_29, %c0_30] : memref<8x8x128xf32, #tpu.memory_space<vmem>>, vector<1x8x128xf32>
    %57 = vector.shape_cast %56 : vector<1x8x128xf32> to vector<8x128xf32>
    %cst_31 = arith.constant dense<0.000000e+00> : vector<8x128xf32>
    %58 = tpu.matmul %50, %3, %cst_31 {dimension_numbers = #tpu.dot_dimension_numbers<[1], [0], [0], [1], [0, 0, 1, 1], [], []>} : vector<8x128xf32>, vector<128x128xf32>, vector<8x128xf32> -> vector<8x128xf32>
    %59 = arith.addf %57, %58 : vector<8x128xf32>
    %60 = math.tanh %59 : vector<8x128xf32>
    %61 = arith.index_cast %c5_i32 : i32 to index
    %c0_32 = arith.constant 0 : index
    %c0_33 = arith.constant 0 : index
    %62 = vector.load %arg5[%61, %c0_32, %c0_33] : memref<8x8x128xf32, #tpu.memory_space<vmem>>, vector<1x8x128xf32>
    %63 = vector.shape_cast %62 : vector<1x8x128xf32> to vector<8x128xf32>
    %64 = vector.shape_cast %60 : vector<8x128xf32> to vector<1x8x128xf32>
    tpu.vector_store %arg5[%61, %c0_32, %c0_33], %64 {strides = array<i32>} : memref<8x8x128xf32, #tpu.memory_space<vmem>>, vector<1x8x128xf32>,
    %c6_i32 = arith.constant 6 : i32
    %65 = arith.index_cast %c6_i32 : i32 to index
    %c0_34 = arith.constant 0 : index
    %c0_35 = arith.constant 0 : index
    %66 = vector.load %arg2[%65, %c0_34, %c0_35] : memref<8x8x128xf32, #tpu.memory_space<vmem>>, vector<1x8x128xf32>
    %67 = vector.shape_cast %66 : vector<1x8x128xf32> to vector<8x128xf32>
    %cst_36 = arith.constant dense<0.000000e+00> : vector<8x128xf32>
    %68 = tpu.matmul %60, %3, %cst_36 {dimension_numbers = #tpu.dot_dimension_numbers<[1], [0], [0], [1], [0, 0, 1, 1], [], []>} : vector<8x128xf32>, vector<128x128xf32>, vector<8x128xf32> -> vector<8x128xf32>
    %69 = arith.addf %67, %68 : vector<8x128xf32>
    %70 = math.tanh %69 : vector<8x128xf32>
    %71 = arith.index_cast %c6_i32 : i32 to index
    %c0_37 = arith.constant 0 : index
    %c0_38 = arith.constant 0 : index
    %72 = vector.load %arg5[%71, %c0_37, %c0_38] : memref<8x8x128xf32, #tpu.memory_space<vmem>>, vector<1x8x128xf32>
    %73 = vector.shape_cast %72 : vector<1x8x128xf32> to vector<8x128xf32>
    %74 = vector.shape_cast %70 : vector<8x128xf32> to vector<1x8x128xf32>
    tpu.vector_store %arg5[%71, %c0_37, %c0_38], %74 {strides = array<i32>} : memref<8x8x128xf32, #tpu.memory_space<vmem>>, vector<1x8x128xf32>,
    %c7_i32 = arith.constant 7 : i32
    %75 = arith.index_cast %c7_i32 : i32 to index
    %c0_39 = arith.constant 0 : index
    %c0_40 = arith.constant 0 : index
    %76 = vector.load %arg2[%75, %c0_39, %c0_40] : memref<8x8x128xf32, #tpu.memory_space<vmem>>, vector<1x8x128xf32>
    %77 = vector.shape_cast %76 : vector<1x8x128xf32> to vector<8x128xf32>
    %cst_41 = arith.constant dense<0.000000e+00> : vector<8x128xf32>
    %78 = tpu.matmul %70, %3, %cst_41 {dimension_numbers = #tpu.dot_dimension_numbers<[1], [0], [0], [1], [0, 0, 1, 1], [], []>} : vector<8x128xf32>, vector<128x128xf32>, vector<8x128xf32> -> vector<8x128xf32>
    %79 = arith.addf %77, %78 : vector<8x128xf32>
    %80 = math.tanh %79 : vector<8x128xf32>
    %81 = arith.index_cast %c7_i32 : i32 to index
    %c0_42 = arith.constant 0 : index
    %c0_43 = arith.constant 0 : index
    %82 = vector.load %arg5[%81, %c0_42, %c0_43] : memref<8x8x128xf32, #tpu.memory_space<vmem>>, vector<1x8x128xf32>
    %83 = vector.shape_cast %82 : vector<1x8x128xf32> to vector<8x128xf32>
    %84 = vector.shape_cast %80 : vector<8x128xf32> to vector<1x8x128xf32>
    tpu.vector_store %arg5[%81, %c0_42, %c0_43], %84 {strides = array<i32>} : memref<8x8x128xf32, #tpu.memory_space<vmem>>, vector<1x8x128xf32>,
    %c8_i32 = arith.constant 8 : i32
    %c0_44 = arith.constant 0 : index
    %c0_45 = arith.constant 0 : index
    %85 = vector.load %arg7[%c0_44, %c0_45] : memref<8x128xf32, #tpu.memory_space<vmem>>, vector<8x128xf32>
    tpu.vector_store %arg7[%c0_44, %c0_45], %80 {strides = array<i32>} : memref<8x128xf32, #tpu.memory_space<vmem>>, vector<8x128xf32>,
    %c0_46 = arith.constant 0 : index
    %c0_47 = arith.constant 0 : index
    %c0_48 = arith.constant 0 : index
    %86 = vector.load %arg6[%c0_46, %c0_47, %c0_48] : memref<1x8x128xf32, #tpu.memory_space<vmem>>, vector<1x8x128xf32>
    %87 = vector.shape_cast %86 : vector<1x8x128xf32> to vector<8x128xf32>
    %88 = vector.shape_cast %80 : vector<8x128xf32> to vector<1x8x128xf32>
    tpu.vector_store %arg6[%c0_46, %c0_47, %c0_48], %88 {strides = array<i32>} : memref<1x8x128xf32, #tpu.memory_space<vmem>>, vector<1x8x128xf32>,
    return
  }
  func.func @transform_0(%arg0: i32, %arg1: i32) -> (i32, i32, i32) {
    %c0_i32 = arith.constant 0 : i32
    %c0_i32_0 = arith.constant 0 : i32
    return %arg1, %arg0, %c0_i32 : i32, i32, i32
  }
  func.func @transform_1(%arg0: i32, %arg1: i32) -> (i32, i32, i32) {
    %c0_i32 = arith.constant 0 : i32
    %c0_i32_0 = arith.constant 0 : i32
    %c0_i32_1 = arith.constant 0 : i32
    return %c0_i32, %arg0, %c0_i32_0 : i32, i32, i32
  }
  func.func @transform_2(%arg0: i32, %arg1: i32) -> (i32, i32) {
    %c0_i32 = arith.constant 0 : i32
    %c0_i32_0 = arith.constant 0 : i32
    %c0_i32_1 = arith.constant 0 : i32
    return %c0_i32, %c0_i32_0 : i32, i32
  }
  func.func @transform_3(%arg0: i32, %arg1: i32) -> (i32, i32, i32) {
    %c0_i32 = arith.constant 0 : i32
    %c0_i32_0 = arith.constant 0 : i32
    return %arg1, %arg0, %c0_i32 : i32, i32, i32
  }
  func.func @transform_4(%arg0: i32, %arg1: i32) -> (i32, i32, i32) {
    %c0_i32 = arith.constant 0 : i32
    %c0_i32_0 = arith.constant 0 : i32
    %c0_i32_1 = arith.constant 0 : i32
    return %c0_i32, %arg0, %c0_i32_0 : i32, i32, i32
  }
}

</mosaic_0001>

<llo_original>
// kernel: tpu_custom_call.1
$region0: #{tpu_custom_call.1}
  #allocation0 [shape = 'u32[]', space=smem, size = 0x4, offset = 0x4, fixed_abs, tag = 'smem constant byte address 0x4 - core index']
  #allocation1 [shape = 'u32[144,128]{1,0:T(1,128)}', space=vmem, size = 0x12000, scoped, tag = 'internal scratch']
  #allocation2 [shape = 'f32[8,128]{1,0:T(8,128)}', space=vmem, size = 0x1000, scoped, tag = 'scratch operand']
  %s0 = inlined_call_operand.hbm [shape: f32[8,8,128], index: 0, kind: input, shape index: {}]
  %s1 = inlined_call_operand.hbm [shape: f32[1,8,128], index: 1, kind: input, shape index: {}]
  %s2 = inlined_call_operand.hbm [shape: f32[128,128], index: 2, kind: input, shape index: {}]
  %s3 = inlined_call_operand.hbm [shape: f32[8,8,128], index: 3, kind: output, shape index: {0}]
  %s4 = inlined_call_operand.hbm [shape: f32[1,8,128], index: 4, kind: output, shape index: {1}]
  %5 = xla_tuple %s3, %s4
  %s6 = sld [smem:[#allocation0]]
  $region46: #{tpu_custom_call.1} parent=0
    _
  %s8 = ssub.s32 1, %s6
  %s9 = scalar_select 0, %s8, %s6
  $region1: #{tpu_custom_call.1} parent=0
    #allocation3 [shape = 'u8[32768]{0}', space=vmem, size = 0x8000, scoped, tag = 'input window, operand 0, single buffered']
    #allocation4 [shape = 's32[1]{0}', space=sflag, size = 0x4, scoped, tag = 'scoped memory for tpu_custom_call.1']
    #allocation5 [shape = 's32[1]{0}', space=sflag, size = 0x4, scoped, tag = 'scoped memory for tpu_custom_call.1']
    #allocation6 [shape = 'u8[4096]{0}', space=vmem, size = 0x1000, scoped, tag = 'input window, operand 1, single buffered']
    #allocation7 [shape = 's32[1]{0}', space=sflag, size = 0x4, scoped, tag = 'scoped memory for tpu_custom_call.1']
    #allocation8 [shape = 'u8[65536]{0}', space=vmem, size = 0x10000, scoped, tag = 'input window, operand 2, single buffered']
    #allocation9 [shape = 'u8[32768]{0}', space=vmem, size = 0x8000, scoped, tag = 'output window, operand 0, single buffered']
    #allocation10 [shape = 'u8[4096]{0}', space=vmem, size = 0x1000, scoped, tag = 'output window, operand 1, single buffered']
    #allocation11 [shape = 's32[1]{0}', space=sflag, size = 0x4, scoped, tag = 'scoped memory for tpu_custom_call.1']
    %10 = vsyncpa [#allocation4], 0
    %11 = vsyncpa [#allocation7], 0
    %12 = vsyncpa [#allocation5], 0
    %13 = vsyncpa [#allocation11], 0
    // Predicated region
    $region2: #{tpu_custom_call.1} parent=1 // pred_check
      _
    $region3: #{tpu_custom_call.1} parent=1 // pred_check_branch
      %15 = sbr.rel (0) target = $region5
    $region4: #{tpu_custom_call.1} parent=1 // pred_region
      %s17 = ssub.s32 1024, 1024
      %18 = vsyncadd [#allocation4], %s17
      %s19 = sshll.u32 [#allocation3], 4
      %s20 = int_to_ptr.vmem [resolvable:$true] %s19
      %25 = dma.hbm_to_vmem [thread:$0]  %s0, 1024, %s20, [#allocation4], 128, 128, 8
    $region5: #{tpu_custom_call.1} parent=1 // pred_fallthru
      _
    // Predicated region
    $region6: #{tpu_custom_call.1} parent=1 // pred_check
      _
    $region7: #{tpu_custom_call.1} parent=1 // pred_check_branch
      %27 = sbr.rel (0) target = $region9
    $region8: #{tpu_custom_call.1} parent=1 // pred_region
      %s29 = ssub.s32 128, 128
      %30 = vsyncadd [#allocation7], %s29
      %s32 = sshll.u32 [#allocation6], 4
      %s33 = int_to_ptr.vmem [resolvable:$true] %s32
      %35 = dma.hbm_to_vmem [thread:$0]  %s1, 128, %s33, [#allocation7]
    $region9: #{tpu_custom_call.1} parent=1 // pred_fallthru
      _
    // Predicated region
    $region10: #{tpu_custom_call.1} parent=1 // pred_check
      _
    $region11: #{tpu_custom_call.1} parent=1 // pred_check_branch
      %37 = sbr.rel (0) target = $region13
    $region12: #{tpu_custom_call.1} parent=1 // pred_region
      %s39 = ssub.s32 2048, 2048
      %40 = vsyncadd [#allocation7], %s39
      %s41 = sshll.u32 [#allocation8], 4
      %s42 = int_to_ptr.vmem [resolvable:$true] %s41
      %47 = dma.hbm_to_vmem [thread:$0]  %s2, 2048, %s42, [#allocation7], 128, 128, 8
    $region13: #{tpu_custom_call.1} parent=1 // pred_fallthru
      _
    // Predicated region
    $region14: #{tpu_custom_call.1} parent=1 // pred_check
      _
    $region15: #{tpu_custom_call.1} parent=1 // pred_check_branch
      %49 = sbr.rel (0) target = $region17
    $region16: #{tpu_custom_call.1} parent=1 // pred_region
      %50 = dma.done [#allocation4], 1024
    $region17: #{tpu_custom_call.1} parent=1 // pred_fallthru
      _
    // Predicated region
    $region18: #{tpu_custom_call.1} parent=1 // pred_check
      _
    $region19: #{tpu_custom_call.1} parent=1 // pred_check_branch
      %52 = sbr.rel (0) target = $region21
    $region20: #{tpu_custom_call.1} parent=1 // pred_region
      %53 = dma.done [#allocation7], 128
    $region21: #{tpu_custom_call.1} parent=1 // pred_fallthru
      _
    // Predicated region
    $region22: #{tpu_custom_call.1} parent=1 // pred_check
      _
    $region23: #{tpu_custom_call.1} parent=1 // pred_check_branch
      %55 = sbr.rel (0) target = $region25
    $region24: #{tpu_custom_call.1} parent=1 // pred_region
      %56 = dma.done [#allocation7], 2048
    $region25: #{tpu_custom_call.1} parent=1 // pred_fallthru
      _
    %p57 = scmp.eq.s32.totalorder 0, 0
    // Predicated region
    $region26: #{tpu_custom_call.1} parent=1 // pred_check
      %p58 = pneg %p57
    $region27: #{tpu_custom_call.1} parent=1 // pred_check_branch
      %60 = sbr.rel (%p58) target = $region29
    $region28: #{tpu_custom_call.1} parent=1 // pred_region
      %v61 = vld [vmem:[#allocation6] sm:$0xff]
      %62 = vst [vmem:[#allocation2] sm:$0xff] %v61
    $region29: #{tpu_custom_call.1} parent=1 // pred_fallthru
      _
    %v63 = vld [vmem:[#allocation8] sm:$0xff]
    %v64 = vld [vmem:[#allocation8 + $0x8] sm:$0xff]
    %v65 = vld [vmem:[#allocation8 + $0x10] sm:$0xff]
    %v66 = vld [vmem:[#allocation8 + $0x18] sm:$0xff]
    %v67 = vld [vmem:[#allocation8 + $0x20] sm:$0xff]
    %v68 = vld [vmem:[#allocation8 + $0x28] sm:$0xff]
    %v69 = vld [vmem:[#allocation8 + $0x30] sm:$0xff]
    %v70 = vld [vmem:[#allocation8 + $0x38] sm:$0xff]
    %v71 = vld [vmem:[#allocation8 + $0x40] sm:$0xff]
    %v72 = vld [vmem:[#allocation8 + $0x48] sm:$0xff]
    %v73 = vld [vmem:[#allocation8 + $0x50] sm:$0xff]
    %v74 = vld [vmem:[#allocation8 + $0x58] sm:$0xff]
    %v75 = vld [vmem:[#allocation8 + $0x60] sm:$0xff]
    %v76 = vld [vmem:[#allocation8 + $0x68] sm:$0xff]
    %v77 = vld [vmem:[#allocation8 + $0x70] sm:$0xff]
    %v78 = vld [vmem:[#allocation8 + $0x78] sm:$0xff]
    %v79 = vld [vmem:[#allocation2] sm:$0xff]
    %v80 = vld [vmem:[#allocation3] sm:$0xff]
    %81 = vmatprep.subr.mxu0 0.0
    %82 = vmatpush1.msra.mxu0 %v78
    %83 = vmatprep.subr.mxu0 0.0
    %84 = vmatpush1.msra.mxu0 %v77
    %85 = vmatprep.subr.mxu0 0.0
    %86 = vmatpush1.msra.mxu0 %v76
    %87 = vmatprep.subr.mxu0 0.0
    %88 = vmatpush1.msra.mxu0 %v75
    %89 = vmatprep.subr.mxu0 0.0
    %90 = vmatpush1.msra.mxu0 %v74
    %91 = vmatprep.subr.mxu0 0.0
    %92 = vmatpush1.msra.mxu0 %v73
    %93 = vmatprep.subr.mxu0 0.0
    %94 = vmatpush1.msra.mxu0 %v72
    %95 = vmatprep.subr.mxu0 0.0
    %96 = vmatpush1.msra.mxu0 %v71
    %97 = vmatprep.subr.mxu0 0.0
    %98 = vmatpush1.msra.mxu0 %v70
    %99 = vmatprep.subr.mxu0 0.0
    %100 = vmatpush1.msra.mxu0 %v69
    %101 = vmatprep.subr.mxu0 0.0
    %102 = vmatpush1.msra.mxu0 %v68
    %103 = vmatprep.subr.mxu0 0.0
    %104 = vmatpush1.msra.mxu0 %v67
    %105 = vmatprep.subr.mxu0 0.0
    %106 = vmatpush1.msra.mxu0 %v66
    %107 = vmatprep.subr.mxu0 0.0
    %108 = vmatpush1.msra.mxu0 %v65
    %109 = vmatprep.subr.mxu0 0.0
    %110 = vmatpush1.msra.mxu0 %v64
    %111 = vmatprep.subr.mxu0 0.0
    %112 = vmatpush1.msra.mxu0 %v63
    %113 = vmatprep.subr.mxu0 0.0
    %114 = vmatpush2.msra.mxu0 0.0
    %115 = vmatprep.subr.mxu0 0.0
    %116 = vmatpush2.msra.mxu0 0.0
    %117 = vmatprep.subr.mxu0 0.0
    %118 = vmatpush2.msra.mxu0 0.0
    %119 = vmatprep.subr.mxu0 0.0
    %120 = vmatpush2.msra.mxu0 0.0
    %121 = vmatprep.subr.mxu0 0.0
    %122 = vmatpush2.msra.mxu0 0.0
    %123 = vmatprep.subr.mxu0 0.0
    %124 = vmatpush2.msra.mxu0 0.0
    %125 = vmatprep.subr.mxu0 0.0
    %126 = vmatpush2.msra.mxu0 0.0
    %127 = vmatprep.subr.mxu0 0.0
    %128 = vmatpush2.msra.mxu0 0.0
    %129 = vmatprep.subr.mxu0 0.0
    %130 = vmatpush2.msra.mxu0 0.0
    %131 = vmatprep.subr.mxu0 0.0
    %132 = vmatpush2.msra.mxu0 0.0
    %133 = vmatprep.subr.mxu0 0.0
    %134 = vmatpush2.msra.mxu0 0.0
    %135 = vmatprep.subr.mxu0 0.0
    %136 = vmatpush2.msra.mxu0 0.0
    %137 = vmatprep.subr.mxu0 0.0
    %138 = vmatpush2.msra.mxu0 0.0
    %139 = vmatprep.subr.mxu0 0.0
    %140 = vmatpush2.msra.mxu0 0.0
    %141 = vmatprep.subr.mxu0 0.0
    %142 = vmatpush2.msra.mxu0 0.0
    %143 = vmatprep.subr.mxu0 0.0
    %144 = vmatpush2.msra.mxu0 0.0
    %145 = vmatprep.mubr.f32.mxu0 0.0
    %146 = vmatmul.mubr.f32.gmra.mxu0 %v79
    %v147 = vpop.f32.mrf.mxu0
    %v148 = vadd.f32 0.0, %v147
    %v149 = vpop.f32.mrf.mxu0
    %150 = vdwg.mxu0
    %v151 = vadd.f32 %v80, %v148
    %v152 = vtanh.pop %v151
    %153 = vst [vmem:[#allocation9] sm:$0xff] %v152
    %s154 = scalar_lea.vmem [#allocation3], 8
    %v155 = vld [vmem:[%s154] sm:$0xff]
    %156 = vmatprep.subr.mxu0 0.0
    %157 = vmatpush1.msra.mxu0 %v78
    %158 = vmatprep.subr.mxu0 0.0
    %159 = vmatpush1.msra.mxu0 %v77
    %160 = vmatprep.subr.mxu0 0.0
    %161 = vmatpush1.msra.mxu0 %v76
    %162 = vmatprep.subr.mxu0 0.0
    %163 = vmatpush1.msra.mxu0 %v75
    %164 = vmatprep.subr.mxu0 0.0
    %165 = vmatpush1.msra.mxu0 %v74
    %166 = vmatprep.subr.mxu0 0.0
    %167 = vmatpush1.msra.mxu0 %v73
    %168 = vmatprep.subr.mxu0 0.0
    %169 = vmatpush1.msra.mxu0 %v72
    %170 = vmatprep.subr.mxu0 0.0
    %171 = vmatpush1.msra.mxu0 %v71
    %172 = vmatprep.subr.mxu0 0.0
    %173 = vmatpush1.msra.mxu0 %v70
    %174 = vmatprep.subr.mxu0 0.0
    %175 = vmatpush1.msra.mxu0 %v69
    %176 = vmatprep.subr.mxu0 0.0
    %177 = vmatpush1.msra.mxu0 %v68
    %178 = vmatprep.subr.mxu0 0.0
    %179 = vmatpush1.msra.mxu0 %v67
    %180 = vmatprep.subr.mxu0 0.0
    %181 = vmatpush1.msra.mxu0 %v66
    %182 = vmatprep.subr.mxu0 0.0
    %183 = vmatpush1.msra.mxu0 %v65
    %184 = vmatprep.subr.mxu0 0.0
    %185 = vmatpush1.msra.mxu0 %v64
    %186 = vmatprep.subr.mxu0 0.0
    %187 = vmatpush1.msra.mxu0 %v63
    %188 = vmatprep.subr.mxu0 0.0
    %189 = vmatpush2.msra.mxu0 0.0
    %190 = vmatprep.subr.mxu0 0.0
    %191 = vmatpush2.msra.mxu0 0.0
    %192 = vmatprep.subr.mxu0 0.0
    %193 = vmatpush2.msra.mxu0 0.0
    %194 = vmatprep.subr.mxu0 0.0
    %195 = vmatpush2.msra.mxu0 0.0
    %196 = vmatprep.subr.mxu0 0.0
    %197 = vmatpush2.msra.mxu0 0.0
    %198 = vmatprep.subr.mxu0 0.0
    %199 = vmatpush2.msra.mxu0 0.0
    %200 = vmatprep.subr.mxu0 0.0
    %201 = vmatpush2.msra.mxu0 0.0
    %202 = vmatprep.subr.mxu0 0.0
    %203 = vmatpush2.msra.mxu0 0.0
    %204 = vmatprep.subr.mxu0 0.0
    %205 = vmatpush2.msra.mxu0 0.0
    %206 = vmatprep.subr.mxu0 0.0
    %207 = vmatpush2.msra.mxu0 0.0
    %208 = vmatprep.subr.mxu0 0.0
    %209 = vmatpush2.msra.mxu0 0.0
    %210 = vmatprep.subr.mxu0 0.0
    %211 = vmatpush2.msra.mxu0 0.0
    %212 = vmatprep.subr.mxu0 0.0
    %213 = vmatpush2.msra.mxu0 0.0
    %214 = vmatprep.subr.mxu0 0.0
    %215 = vmatpush2.msra.mxu0 0.0
    %216 = vmatprep.subr.mxu0 0.0
    %217 = vmatpush2.msra.mxu0 0.0
    %218 = vmatprep.subr.mxu0 0.0
    %219 = vmatpush2.msra.mxu0 0.0
    %220 = vmatprep.mubr.f32.mxu0 0.0
    %221 = vmatmul.mubr.f32.gmra.mxu0 %v152
    %v222 = vpop.f32.mrf.mxu0
    %v223 = vadd.f32 0.0, %v222
    %v224 = vpop.f32.mrf.mxu0
    %225 = vdwg.mxu0
    %v226 = vadd.f32 %v155, %v223
    %v227 = vtanh.pop %v226
    %s228 = scalar_lea.vmem [#allocation9], 8
    %229 = vst [vmem:[%s228] sm:$0xff] %v227
    %s230 = scalar_lea.vmem [#allocation3], 16
    %v231 = vld [vmem:[%s230] sm:$0xff]
    %232 = vmatprep.subr.mxu0 0.0
    %233 = vmatpush1.msra.mxu0 %v78
    %234 = vmatprep.subr.mxu0 0.0
    %235 = vmatpush1.msra.mxu0 %v77
    %236 = vmatprep.subr.mxu0 0.0
    %237 = vmatpush1.msra.mxu0 %v76
    %238 = vmatprep.subr.mxu0 0.0
    %239 = vmatpush1.msra.mxu0 %v75
    %240 = vmatprep.subr.mxu0 0.0
    %241 = vmatpush1.msra.mxu0 %v74
    %242 = vmatprep.subr.mxu0 0.0
    %243 = vmatpush1.msra.mxu0 %v73
    %244 = vmatprep.subr.mxu0 0.0
    %245 = vmatpush1.msra.mxu0 %v72
    %246 = vmatprep.subr.mxu0 0.0
    %247 = vmatpush1.msra.mxu0 %v71
    %248 = vmatprep.subr.mxu0 0.0
    %249 = vmatpush1.msra.mxu0 %v70
    %250 = vmatprep.subr.mxu0 0.0
    %251 = vmatpush1.msra.mxu0 %v69
    %252 = vmatprep.subr.mxu0 0.0
    %253 = vmatpush1.msra.mxu0 %v68
    %254 = vmatprep.subr.mxu0 0.0
    %255 = vmatpush1.msra.mxu0 %v67
    %256 = vmatprep.subr.mxu0 0.0
    %257 = vmatpush1.msra.mxu0 %v66
    %258 = vmatprep.subr.mxu0 0.0
    %259 = vmatpush1.msra.mxu0 %v65
    %260 = vmatprep.subr.mxu0 0.0
    %261 = vmatpush1.msra.mxu0 %v64
    %262 = vmatprep.subr.mxu0 0.0
    %263 = vmatpush1.msra.mxu0 %v63
    %264 = vmatprep.subr.mxu0 0.0
    %265 = vmatpush2.msra.mxu0 0.0
    %266 = vmatprep.subr.mxu0 0.0
    %267 = vmatpush2.msra.mxu0 0.0
    %268 = vmatprep.subr.mxu0 0.0
    %269 = vmatpush2.msra.mxu0 0.0
    %270 = vmatprep.subr.mxu0 0.0
    %271 = vmatpush2.msra.mxu0 0.0
    %272 = vmatprep.subr.mxu0 0.0
    %273 = vmatpush2.msra.mxu0 0.0
    %274 = vmatprep.subr.mxu0 0.0
    %275 = vmatpush2.msra.mxu0 0.0
    %276 = vmatprep.subr.mxu0 0.0
    %277 = vmatpush2.msra.mxu0 0.0
    %278 = vmatprep.subr.mxu0 0.0
    %279 = vmatpush2.msra.mxu0 0.0
    %280 = vmatprep.subr.mxu0 0.0
    %281 = vmatpush2.msra.mxu0 0.0
    %282 = vmatprep.subr.mxu0 0.0
    %283 = vmatpush2.msra.mxu0 0.0
    %284 = vmatprep.subr.mxu0 0.0
    %285 = vmatpush2.msra.mxu0 0.0
    %286 = vmatprep.subr.mxu0 0.0
    %287 = vmatpush2.msra.mxu0 0.0
    %288 = vmatprep.subr.mxu0 0.0
    %289 = vmatpush2.msra.mxu0 0.0
    %290 = vmatprep.subr.mxu0 0.0
    %291 = vmatpush2.msra.mxu0 0.0
    %292 = vmatprep.subr.mxu0 0.0
    %293 = vmatpush2.msra.mxu0 0.0
    %294 = vmatprep.subr.mxu0 0.0
    %295 = vmatpush2.msra.mxu0 0.0
    %296 = vmatprep.mubr.f32.mxu0 0.0
    %297 = vmatmul.mubr.f32.gmra.mxu0 %v227
    %v298 = vpop.f32.mrf.mxu0
    %v299 = vadd.f32 0.0, %v298
    %v300 = vpop.f32.mrf.mxu0
    %301 = vdwg.mxu0
    %v302 = vadd.f32 %v231, %v299
    %v303 = vtanh.pop %v302
    %s304 = scalar_lea.vmem [#allocation9], 16
    %305 = vst [vmem:[%s304] sm:$0xff] %v303
    %s306 = scalar_lea.vmem [#allocation3], 24
    %v307 = vld [vmem:[%s306] sm:$0xff]
    %308 = vmatprep.subr.mxu0 0.0
    %309 = vmatpush1.msra.mxu0 %v78
    %310 = vmatprep.subr.mxu0 0.0
    %311 = vmatpush1.msra.mxu0 %v77
    %312 = vmatprep.subr.mxu0 0.0
    %313 = vmatpush1.msra.mxu0 %v76
    %314 = vmatprep.subr.mxu0 0.0
    %315 = vmatpush1.msra.mxu0 %v75
    %316 = vmatprep.subr.mxu0 0.0
    %317 = vmatpush1.msra.mxu0 %v74
    %318 = vmatprep.subr.mxu0 0.0
    %319 = vmatpush1.msra.mxu0 %v73
    %320 = vmatprep.subr.mxu0 0.0
    %321 = vmatpush1.msra.mxu0 %v72
    %322 = vmatprep.subr.mxu0 0.0
    %323 = vmatpush1.msra.mxu0 %v71
    %324 = vmatprep.subr.mxu0 0.0
    %325 = vmatpush1.msra.mxu0 %v70
    %326 = vmatprep.subr.mxu0 0.0
    %327 = vmatpush1.msra.mxu0 %v69
    %328 = vmatprep.subr.mxu0 0.0
    %329 = vmatpush1.msra.mxu0 %v68
    %330 = vmatprep.subr.mxu0 0.0
    %331 = vmatpush1.msra.mxu0 %v67
    %332 = vmatprep.subr.mxu0 0.0
    %333 = vmatpush1.msra.mxu0 %v66
    %334 = vmatprep.subr.mxu0 0.0
    %335 = vmatpush1.msra.mxu0 %v65
    %336 = vmatprep.subr.mxu0 0.0
    %337 = vmatpush1.msra.mxu0 %v64
    %338 = vmatprep.subr.mxu0 0.0
    %339 = vmatpush1.msra.mxu0 %v63
    %340 = vmatprep.subr.mxu0 0.0
    %341 = vmatpush2.msra.mxu0 0.0
    %342 = vmatprep.subr.mxu0 0.0
    %343 = vmatpush2.msra.mxu0 0.0
    %344 = vmatprep.subr.mxu0 0.0
    %345 = vmatpush2.msra.mxu0 0.0
    %346 = vmatprep.subr.mxu0 0.0
    %347 = vmatpush2.msra.mxu0 0.0
    %348 = vmatprep.subr.mxu0 0.0
    %349 = vmatpush2.msra.mxu0 0.0
    %350 = vmatprep.subr.mxu0 0.0
    %351 = vmatpush2.msra.mxu0 0.0
    %352 = vmatprep.subr.mxu0 0.0
    %353 = vmatpush2.msra.mxu0 0.0
    %354 = vmatprep.subr.mxu0 0.0
    %355 = vmatpush2.msra.mxu0 0.0
    %356 = vmatprep.subr.mxu0 0.0
    %357 = vmatpush2.msra.mxu0 0.0
    %358 = vmatprep.subr.mxu0 0.0
    %359 = vmatpush2.msra.mxu0 0.0
    %360 = vmatprep.subr.mxu0 0.0
    %361 = vmatpush2.msra.mxu0 0.0
    %362 = vmatprep.subr.mxu0 0.0
    %363 = vmatpush2.msra.mxu0 0.0
    %364 = vmatprep.subr.mxu0 0.0
    %365 = vmatpush2.msra.mxu0 0.0
    %366 = vmatprep.subr.mxu0 0.0
    %367 = vmatpush2.msra.mxu0 0.0
    %368 = vmatprep.subr.mxu0 0.0
    %369 = vmatpush2.msra.mxu0 0.0
    %370 = vmatprep.subr.mxu0 0.0
    %371 = vmatpush2.msra.mxu0 0.0
    %372 = vmatprep.mubr.f32.mxu0 0.0
    %373 = vmatmul.mubr.f32.gmra.mxu0 %v303
    %v374 = vpop.f32.mrf.mxu0
    %v375 = vadd.f32 0.0, %v374
    %v376 = vpop.f32.mrf.mxu0
    %377 = vdwg.mxu0
    %v378 = vadd.f32 %v307, %v375
    %v379 = vtanh.pop %v378
    %s380 = scalar_lea.vmem [#allocation9], 24
    %381 = vst [vmem:[%s380] sm:$0xff] %v379
    %s382 = scalar_lea.vmem [#allocation3], 32
    %v383 = vld [vmem:[%s382] sm:$0xff]
    %384 = vmatprep.subr.mxu0 0.0
    %385 = vmatpush1.msra.mxu0 %v78
    %386 = vmatprep.subr.mxu0 0.0
    %387 = vmatpush1.msra.mxu0 %v77
    %388 = vmatprep.subr.mxu0 0.0
    %389 = vmatpush1.msra.mxu0 %v76
    %390 = vmatprep.subr.mxu0 0.0
    %391 = vmatpush1.msra.mxu0 %v75
    %392 = vmatprep.subr.mxu0 0.0
    %393 = vmatpush1.msra.mxu0 %v74
    %394 = vmatprep.subr.mxu0 0.0
    %395 = vmatpush1.msra.mxu0 %v73
    %396 = vmatprep.subr.mxu0 0.0
    %397 = vmatpush1.msra.mxu0 %v72
    %398 = vmatprep.subr.mxu0 0.0
    %399 = vmatpush1.msra.mxu0 %v71
    %400 = vmatprep.subr.mxu0 0.0
    %401 = vmatpush1.msra.mxu0 %v70
    %402 = vmatprep.subr.mxu0 0.0
    %403 = vmatpush1.msra.mxu0 %v69
    %404 = vmatprep.subr.mxu0 0.0
    %405 = vmatpush1.msra.mxu0 %v68
    %406 = vmatprep.subr.mxu0 0.0
    %407 = vmatpush1.msra.mxu0 %v67
    %408 = vmatprep.subr.mxu0 0.0
    %409 = vmatpush1.msra.mxu0 %v66
    %410 = vmatprep.subr.mxu0 0.0
    %411 = vmatpush1.msra.mxu0 %v65
    %412 = vmatprep.subr.mxu0 0.0
    %413 = vmatpush1.msra.mxu0 %v64
    %414 = vmatprep.subr.mxu0 0.0
    %415 = vmatpush1.msra.mxu0 %v63
    %416 = vmatprep.subr.mxu0 0.0
    %417 = vmatpush2.msra.mxu0 0.0
    %418 = vmatprep.subr.mxu0 0.0
    %419 = vmatpush2.msra.mxu0 0.0
    %420 = vmatprep.subr.mxu0 0.0
    %421 = vmatpush2.msra.mxu0 0.0
    %422 = vmatprep.subr.mxu0 0.0
    %423 = vmatpush2.msra.mxu0 0.0
    %424 = vmatprep.subr.mxu0 0.0
    %425 = vmatpush2.msra.mxu0 0.0
    %426 = vmatprep.subr.mxu0 0.0
    %427 = vmatpush2.msra.mxu0 0.0
    %428 = vmatprep.subr.mxu0 0.0
    %429 = vmatpush2.msra.mxu0 0.0
    %430 = vmatprep.subr.mxu0 0.0
    %431 = vmatpush2.msra.mxu0 0.0
    %432 = vmatprep.subr.mxu0 0.0
    %433 = vmatpush2.msra.mxu0 0.0
    %434 = vmatprep.subr.mxu0 0.0
    %435 = vmatpush2.msra.mxu0 0.0
    %436 = vmatprep.subr.mxu0 0.0
    %437 = vmatpush2.msra.mxu0 0.0
    %438 = vmatprep.subr.mxu0 0.0
    %439 = vmatpush2.msra.mxu0 0.0
    %440 = vmatprep.subr.mxu0 0.0
    %441 = vmatpush2.msra.mxu0 0.0
    %442 = vmatprep.subr.mxu0 0.0
    %443 = vmatpush2.msra.mxu0 0.0
    %444 = vmatprep.subr.mxu0 0.0
    %445 = vmatpush2.msra.mxu0 0.0
    %446 = vmatprep.subr.mxu0 0.0
    %447 = vmatpush2.msra.mxu0 0.0
    %448 = vmatprep.mubr.f32.mxu0 0.0
    %449 = vmatmul.mubr.f32.gmra.mxu0 %v379
    %v450 = vpop.f32.mrf.mxu0
    %v451 = vadd.f32 0.0, %v450
    %v452 = vpop.f32.mrf.mxu0
    %453 = vdwg.mxu0
    %v454 = vadd.f32 %v383, %v451
    %v455 = vtanh.pop %v454
    %s456 = scalar_lea.vmem [#allocation9], 32
    %457 = vst [vmem:[%s456] sm:$0xff] %v455
    %s458 = scalar_lea.vmem [#allocation3], 40
    %v459 = vld [vmem:[%s458] sm:$0xff]
    %460 = vmatprep.subr.mxu0 0.0
    %461 = vmatpush1.msra.mxu0 %v78
    %462 = vmatprep.subr.mxu0 0.0
    %463 = vmatpush1.msra.mxu0 %v77
    %464 = vmatprep.subr.mxu0 0.0
    %465 = vmatpush1.msra.mxu0 %v76
    %466 = vmatprep.subr.mxu0 0.0
    %467 = vmatpush1.msra.mxu0 %v75
    %468 = vmatprep.subr.mxu0 0.0
    %469 = vmatpush1.msra.mxu0 %v74
    %470 = vmatprep.subr.mxu0 0.0
    %471 = vmatpush1.msra.mxu0 %v73
    %472 = vmatprep.subr.mxu0 0.0
    %473 = vmatpush1.msra.mxu0 %v72
    %474 = vmatprep.subr.mxu0 0.0
    %475 = vmatpush1.msra.mxu0 %v71
    %476 = vmatprep.subr.mxu0 0.0
    %477 = vmatpush1.msra.mxu0 %v70
    %478 = vmatprep.subr.mxu0 0.0
    %479 = vmatpush1.msra.mxu0 %v69
    %480 = vmatprep.subr.mxu0 0.0
    %481 = vmatpush1.msra.mxu0 %v68
    %482 = vmatprep.subr.mxu0 0.0
    %483 = vmatpush1.msra.mxu0 %v67
    %484 = vmatprep.subr.mxu0 0.0
    %485 = vmatpush1.msra.mxu0 %v66
    %486 = vmatprep.subr.mxu0 0.0
    %487 = vmatpush1.msra.mxu0 %v65
    %488 = vmatprep.subr.mxu0 0.0
    %489 = vmatpush1.msra.mxu0 %v64
    %490 = vmatprep.subr.mxu0 0.0
    %491 = vmatpush1.msra.mxu0 %v63
    %492 = vmatprep.subr.mxu0 0.0
    %493 = vmatpush2.msra.mxu0 0.0
    %494 = vmatprep.subr.mxu0 0.0
    %495 = vmatpush2.msra.mxu0 0.0
    %496 = vmatprep.subr.mxu0 0.0
    %497 = vmatpush2.msra.mxu0 0.0
    %498 = vmatprep.subr.mxu0 0.0
    %499 = vmatpush2.msra.mxu0 0.0
    %500 = vmatprep.subr.mxu0 0.0
    %501 = vmatpush2.msra.mxu0 0.0
    %502 = vmatprep.subr.mxu0 0.0
    %503 = vmatpush2.msra.mxu0 0.0
    %504 = vmatprep.subr.mxu0 0.0
    %505 = vmatpush2.msra.mxu0 0.0
    %506 = vmatprep.subr.mxu0 0.0
    %507 = vmatpush2.msra.mxu0 0.0
    %508 = vmatprep.subr.mxu0 0.0
    %509 = vmatpush2.msra.mxu0 0.0
    %510 = vmatprep.subr.mxu0 0.0
    %511 = vmatpush2.msra.mxu0 0.0
    %512 = vmatprep.subr.mxu0 0.0
    %513 = vmatpush2.msra.mxu0 0.0
    %514 = vmatprep.subr.mxu0 0.0
    %515 = vmatpush2.msra.mxu0 0.0
    %516 = vmatprep.subr.mxu0 0.0
    %517 = vmatpush2.msra.mxu0 0.0
    %518 = vmatprep.subr.mxu0 0.0
    %519 = vmatpush2.msra.mxu0 0.0
    %520 = vmatprep.subr.mxu0 0.0
    %521 = vmatpush2.msra.mxu0 0.0
    %522 = vmatprep.subr.mxu0 0.0
    %523 = vmatpush2.msra.mxu0 0.0
    %524 = vmatprep.mubr.f32.mxu0 0.0
    %525 = vmatmul.mubr.f32.gmra.mxu0 %v455
    %v526 = vpop.f32.mrf.mxu0
    %v527 = vadd.f32 0.0, %v526
    %v528 = vpop.f32.mrf.mxu0
    %529 = vdwg.mxu0
    %v530 = vadd.f32 %v459, %v527
    %v531 = vtanh.pop %v530
    %s532 = scalar_lea.vmem [#allocation9], 40
    %533 = vst [vmem:[%s532] sm:$0xff] %v531
    %s534 = scalar_lea.vmem [#allocation3], 48
    %v535 = vld [vmem:[%s534] sm:$0xff]
    %536 = vmatprep.subr.mxu0 0.0
    %537 = vmatpush1.msra.mxu0 %v78
    %538 = vmatprep.subr.mxu0 0.0
    %539 = vmatpush1.msra.mxu0 %v77
    %540 = vmatprep.subr.mxu0 0.0
    %541 = vmatpush1.msra.mxu0 %v76
    %542 = vmatprep.subr.mxu0 0.0
    %543 = vmatpush1.msra.mxu0 %v75
    %544 = vmatprep.subr.mxu0 0.0
    %545 = vmatpush1.msra.mxu0 %v74
    %546 = vmatprep.subr.mxu0 0.0
    %547 = vmatpush1.msra.mxu0 %v73
    %548 = vmatprep.subr.mxu0 0.0
    %549 = vmatpush1.msra.mxu0 %v72
    %550 = vmatprep.subr.mxu0 0.0
    %551 = vmatpush1.msra.mxu0 %v71
    %552 = vmatprep.subr.mxu0 0.0
    %553 = vmatpush1.msra.mxu0 %v70
    %554 = vmatprep.subr.mxu0 0.0
    %555 = vmatpush1.msra.mxu0 %v69
    %556 = vmatprep.subr.mxu0 0.0
    %557 = vmatpush1.msra.mxu0 %v68
    %558 = vmatprep.subr.mxu0 0.0
    %559 = vmatpush1.msra.mxu0 %v67
    %560 = vmatprep.subr.mxu0 0.0
    %561 = vmatpush1.msra.mxu0 %v66
    %562 = vmatprep.subr.mxu0 0.0
    %563 = vmatpush1.msra.mxu0 %v65
    %564 = vmatprep.subr.mxu0 0.0
    %565 = vmatpush1.msra.mxu0 %v64
    %566 = vmatprep.subr.mxu0 0.0
    %567 = vmatpush1.msra.mxu0 %v63
    %568 = vmatprep.subr.mxu0 0.0
    %569 = vmatpush2.msra.mxu0 0.0
    %570 = vmatprep.subr.mxu0 0.0
    %571 = vmatpush2.msra.mxu0 0.0
    %572 = vmatprep.subr.mxu0 0.0
    %573 = vmatpush2.msra.mxu0 0.0
    %574 = vmatprep.subr.mxu0 0.0
    %575 = vmatpush2.msra.mxu0 0.0
    %576 = vmatprep.subr.mxu0 0.0
    %577 = vmatpush2.msra.mxu0 0.0
    %578 = vmatprep.subr.mxu0 0.0
    %579 = vmatpush2.msra.mxu0 0.0
    %580 = vmatprep.subr.mxu0 0.0
    %581 = vmatpush2.msra.mxu0 0.0
    %582 = vmatprep.subr.mxu0 0.0
    %583 = vmatpush2.msra.mxu0 0.0
    %584 = vmatprep.subr.mxu0 0.0
    %585 = vmatpush2.msra.mxu0 0.0
    %586 = vmatprep.subr.mxu0 0.0
    %587 = vmatpush2.msra.mxu0 0.0
    %588 = vmatprep.subr.mxu0 0.0
    %589 = vmatpush2.msra.mxu0 0.0
    %590 = vmatprep.subr.mxu0 0.0
    %591 = vmatpush2.msra.mxu0 0.0
    %592 = vmatprep.subr.mxu0 0.0
    %593 = vmatpush2.msra.mxu0 0.0
    %594 = vmatprep.subr.mxu0 0.0
    %595 = vmatpush2.msra.mxu0 0.0
    %596 = vmatprep.subr.mxu0 0.0
    %597 = vmatpush2.msra.mxu0 0.0
    %598 = vmatprep.subr.mxu0 0.0
    %599 = vmatpush2.msra.mxu0 0.0
    %600 = vmatprep.mubr.f32.mxu0 0.0
    %601 = vmatmul.mubr.f32.gmra.mxu0 %v531
    %v602 = vpop.f32.mrf.mxu0
    %v603 = vadd.f32 0.0, %v602
    %v604 = vpop.f32.mrf.mxu0
    %605 = vdwg.mxu0
    %v606 = vadd.f32 %v535, %v603
    %v607 = vtanh.pop %v606
    %s608 = scalar_lea.vmem [#allocation9], 48
    %609 = vst [vmem:[%s608] sm:$0xff] %v607
    %s610 = scalar_lea.vmem [#allocation3], 56
    %v611 = vld [vmem:[%s610] sm:$0xff]
    %612 = vmatprep.subr.mxu0 0.0
    %613 = vmatpush1.msra.mxu0 %v78
    %614 = vmatprep.subr.mxu0 0.0
    %615 = vmatpush1.msra.mxu0 %v77
    %616 = vmatprep.subr.mxu0 0.0
    %617 = vmatpush1.msra.mxu0 %v76
    %618 = vmatprep.subr.mxu0 0.0
    %619 = vmatpush1.msra.mxu0 %v75
    %620 = vmatprep.subr.mxu0 0.0
    %621 = vmatpush1.msra.mxu0 %v74
    %622 = vmatprep.subr.mxu0 0.0
    %623 = vmatpush1.msra.mxu0 %v73
    %624 = vmatprep.subr.mxu0 0.0
    %625 = vmatpush1.msra.mxu0 %v72
    %626 = vmatprep.subr.mxu0 0.0
    %627 = vmatpush1.msra.mxu0 %v71
    %628 = vmatprep.subr.mxu0 0.0
    %629 = vmatpush1.msra.mxu0 %v70
    %630 = vmatprep.subr.mxu0 0.0
    %631 = vmatpush1.msra.mxu0 %v69
    %632 = vmatprep.subr.mxu0 0.0
    %633 = vmatpush1.msra.mxu0 %v68
    %634 = vmatprep.subr.mxu0 0.0
    %635 = vmatpush1.msra.mxu0 %v67
    %636 = vmatprep.subr.mxu0 0.0
    %637 = vmatpush1.msra.mxu0 %v66
    %638 = vmatprep.subr.mxu0 0.0
    %639 = vmatpush1.msra.mxu0 %v65
    %640 = vmatprep.subr.mxu0 0.0
    %641 = vmatpush1.msra.mxu0 %v64
    %642 = vmatprep.subr.mxu0 0.0
    %643 = vmatpush1.msra.mxu0 %v63
    %644 = vmatprep.subr.mxu0 0.0
    %645 = vmatpush2.msra.mxu0 0.0
    %646 = vmatprep.subr.mxu0 0.0
    %647 = vmatpush2.msra.mxu0 0.0
    %648 = vmatprep.subr.mxu0 0.0
    %649 = vmatpush2.msra.mxu0 0.0
    %650 = vmatprep.subr.mxu0 0.0
    %651 = vmatpush2.msra.mxu0 0.0
    %652 = vmatprep.subr.mxu0 0.0
    %653 = vmatpush2.msra.mxu0 0.0
    %654 = vmatprep.subr.mxu0 0.0
    %655 = vmatpush2.msra.mxu0 0.0
    %656 = vmatprep.subr.mxu0 0.0
    %657 = vmatpush2.msra.mxu0 0.0
    %658 = vmatprep.subr.mxu0 0.0
    %659 = vmatpush2.msra.mxu0 0.0
    %660 = vmatprep.subr.mxu0 0.0
    %661 = vmatpush2.msra.mxu0 0.0
    %662 = vmatprep.subr.mxu0 0.0
    %663 = vmatpush2.msra.mxu0 0.0
    %664 = vmatprep.subr.mxu0 0.0
    %665 = vmatpush2.msra.mxu0 0.0
    %666 = vmatprep.subr.mxu0 0.0
    %667 = vmatpush2.msra.mxu0 0.0
    %668 = vmatprep.subr.mxu0 0.0
    %669 = vmatpush2.msra.mxu0 0.0
    %670 = vmatprep.subr.mxu0 0.0
    %671 = vmatpush2.msra.mxu0 0.0
    %672 = vmatprep.subr.mxu0 0.0
    %673 = vmatpush2.msra.mxu0 0.0
    %674 = vmatprep.subr.mxu0 0.0
    %675 = vmatpush2.msra.mxu0 0.0
    %676 = vmatprep.mubr.f32.mxu0 0.0
    %677 = vmatmul.mubr.f32.gmra.mxu0 %v607
    %v678 = vpop.f32.mrf.mxu0
    %v679 = vadd.f32 0.0, %v678
    %v680 = vpop.f32.mrf.mxu0
    %681 = vdwg.mxu0
    %v682 = vadd.f32 %v611, %v679
    %v683 = vtanh.pop %v682
    %s684 = scalar_lea.vmem [#allocation9], 56
    %685 = vst [vmem:[%s684] sm:$0xff] %v683
    %686 = vst [vmem:[#allocation2] sm:$0xff] %v683
    %687 = vst [vmem:[#allocation10] sm:$0xff] %v683
    // Predicated region
    $region30: #{tpu_custom_call.1} parent=1 // pred_check
      _
    $region31: #{tpu_custom_call.1} parent=1 // pred_check_branch
      %689 = sbr.rel (0) target = $region33
    $region32: #{tpu_custom_call.1} parent=1 // pred_region
      %s691 = ssub.s32 1024, 1024
      %692 = vsyncadd [#allocation5], %s691
      %s693 = sshll.u32 [#allocation9], 4
      %s694 = int_to_ptr.vmem [resolvable:$true] %s693
      %699 = dma.vmem_to_hbm [thread:$0]  %s694, 1024, %s3, [#allocation5], 128, 128, 8
    $region33: #{tpu_custom_call.1} parent=1 // pred_fallthru
      _
    // Predicated region
    $region34: #{tpu_custom_call.1} parent=1 // pred_check
      _
    $region35: #{tpu_custom_call.1} parent=1 // pred_check_branch
      %701 = sbr.rel (0) target = $region37
    $region36: #{tpu_custom_call.1} parent=1 // pred_region
      %s703 = ssub.s32 128, 128
      %704 = vsyncadd [#allocation11], %s703
      %s706 = sshll.u32 [#allocation10], 4
      %s707 = int_to_ptr.vmem [resolvable:$true] %s706
      %709 = dma.vmem_to_hbm [thread:$0]  %s707, 128, %s4, [#allocation11]
    $region37: #{tpu_custom_call.1} parent=1 // pred_fallthru
      _
    // Predicated region
    $region38: #{tpu_custom_call.1} parent=1 // pred_check
      _
    $region39: #{tpu_custom_call.1} parent=1 // pred_check_branch
      %711 = sbr.rel (0) target = $region41
    $region40: #{tpu_custom_call.1} parent=1 // pred_region
      %712 = dma.done [#allocation5], 1024
    $region41: #{tpu_custom_call.1} parent=1 // pred_fallthru
      _
    // Predicated region
    $region42: #{tpu_custom_call.1} parent=1 // pred_check
      _
    $region43: #{tpu_custom_call.1} parent=1 // pred_check_branch
      %714 = sbr.rel (0) target = $region45
    $region44: #{tpu_custom_call.1} parent=1 // pred_region
      %715 = dma.done [#allocation11], 128
    $region45: #{tpu_custom_call.1} parent=1 // pred_fallthru
      _
    %716 = vsyncpa [#allocation4], 1
    %717 = vsyncpa [#allocation7], 1
    %718 = vsyncpa [#allocation5], 1
    %719 = vsyncpa [#allocation11], 1

</llo_original>
